<compile_context>
chip_gen: v7x
topology: tpu7x:2x2x1
jax: 0.10.0
libtpu: 0.0.40
codegen_flags: <defaults>
</compile_context>

<pallas_src>
import functools

import jax
import jax.numpy as jnp
from jax.experimental import pallas as pl
from jax.experimental.pallas import tpu as pltpu


# ------------------------------------------------------------------------- kernel helpers
def _mm(a, w):
    """(Bb, T, Ka) @ (Ka, N) -> (Bb, T, N); single 2-D MXU matmul with f32 accumulation."""
    bb, tt, ka = a.shape
    out = jnp.dot(a.reshape(bb * tt, ka), w, preferred_element_type=jnp.float32)
    return out.reshape(bb, tt, w.shape[1])


def _causal_conv(src_ref, w_ref, bias, *, Lt, k, d, fuse):
    """Causal dilated conv over a left-padded scratch buffer.

    src_ref: (Bb, Lt+P, C) VMEM scratch; rows [0, P) hold the causal pad / halo.
    w_ref  : (k*C, N) flattened taps (tap-major).
    Returns (Bb, Lt, N) float32 (bias added).
    """
    c = src_ref.shape[2]
    if k == 1:
        return _mm(src_ref[:, pl.ds(0, Lt), :], w_ref[...]) + bias
    if fuse:
        # im2col-lite: concat the k shifted slices along channels -> one matmul with K = k*C.
        xcat = jnp.concatenate(
            [src_ref[:, pl.ds(j * d, Lt), :] for j in range(k)], axis=-1)
        return _mm(xcat, w_ref[...]) + bias
    # per-tap accumulation (used when channels are not lane-aligned)
    acc = _mm(src_ref[:, pl.ds(0, Lt), :], w_ref[0:c, :])
    for j in range(1, k):
        acc = acc + _mm(src_ref[:, pl.ds(j * d, Lt), :], w_ref[j * c:(j + 1) * c, :])
    return acc + bias


# --------------------------------------------------------------------------------- kernel
def _temporal_block_kernel(x_ref, w1_ref, b1_ref, w2_ref, b2_ref, *rest,
                           k, d, P, Lt, has_downsample, fuse1, fuse2):
    """Grid = (batch blocks [parallel], time tiles [arbitrary, sequential carry]).

    x_ref  : (Bb, Lt, Cin)     current input tile (compute dtype)
    w1_ref : (k*Cin, Cout)     conv1 taps, flattened tap-major (weight-norm folded in)
    w2_ref : (k*Cout, Cout)    conv2 taps
    b*_ref : (1, Cout)         biases (f32)
    wd_ref : (Cin, Cout)       1x1 downsample weight (only if has_downsample)
    out_ref: (Bb, Lt, Cout)
    xs_ref : (Bb, Lt+P, Cin)   scratch: causally left-padded x tile (halo carried across tiles)
    hs_ref : (Bb, Lt+P, Cout)  scratch: causally left-padded conv1 activation
    """
    if has_downsample:
        wd_ref, bd_ref, out_ref, xs_ref, hs_ref = rest
    else:
        out_ref, xs_ref, hs_ref = rest
        wd_ref = bd_ref = None

    Bb = xs_ref.shape[0]
    cin = xs_ref.shape[2]
    cout = hs_ref.shape[2]
    t = pl.program_id(1)

    # causal left-pad: zero the P-row head once at the start of each batch block's time sweep
    if P > 0:
        @pl.when(t == 0)
        def _init_causal_pad():
            xs_ref[:, 0:P, :] = jnp.zeros((Bb, P, cin), xs_ref.dtype)
            hs_ref[:, 0:P, :] = jnp.zeros((Bb, P, cout), hs_ref.dtype)

    # stage current tile (single block-wide store)
    xs_ref[:, pl.ds(P, Lt), :] = x_ref[...].astype(xs_ref.dtype)

    b1 = b1_ref[...].astype(jnp.float32)
    b2 = b2_ref[...].astype(jnp.float32)

    # conv1 (causal dilated) + bias + ReLU   (dropout = identity in eval mode)
    h1 = jnp.maximum(_causal_conv(xs_ref, w1_ref, b1, Lt=Lt, k=k, d=d, fuse=fuse1), 0.0)
    hs_ref[:, pl.ds(P, Lt), :] = h1.astype(hs_ref.dtype)

    # conv2 (causal dilated) + bias + ReLU
    h2 = jnp.maximum(_causal_conv(hs_ref, w2_ref, b2, Lt=Lt, k=k, d=d, fuse=fuse2), 0.0)

    # residual path (1x1 conv == matmul) + final ReLU (f32 elementwise)
    if has_downsample:
        res = _mm(x_ref[...], wd_ref[...]) + bd_ref[...].astype(jnp.float32)
    else:
        res = x_ref[...].astype(jnp.float32)
    out_ref[...] = jnp.maximum(h2 + res, 0.0).astype(out_ref.dtype)

    # carry the causal halo (last P rows of this tile) into the head for the next time tile
    if P > 0:
        @pl.when(t + 1 < pl.num_programs(1))
        def _carry_halo():
            xs_ref[:, 0:P, :] = xs_ref[:, pl.ds(Lt, P), :]
            hs_ref[:, 0:P, :] = hs_ref[:, pl.ds(Lt, P), :]


# ----------------------------------------------------------------------- tiling heuristics
def _divisors(n):
    return [i for i in range(1, n + 1) if n % i == 0]


def _choose_time_block(L, P, target):
    if L <= target:
        return L
    best = None
    for lt in _divisors(L):
        if lt > target or lt < max(P, 1):
            continue
        if best is None or (lt % 8 == 0, lt) > (best % 8 == 0, best):  # prefer sublane-aligned
            best = lt
    return best if best is not None else L


def _resident_bytes(bb, lt, P, cin, cout, k, sz_in, sz_out, sz_c, has_ds):
    io = 2 * bb * lt * cin * sz_in + 2 * bb * lt * cout * sz_out        # double-buffered x / out
    scratch = bb * (lt + P) * (cin + cout) * sz_c                        # xs + hs halo scratch
    w = 2 * ((k * cin + (cin if has_ds else 0)) * cout + k * cout * cout) * sz_c + 2 * 3 * cout * 4
    return io + scratch + w


def _choose_batch_block(B, lt, P, cin, cout, k, sz_in, sz_out, sz_c, has_ds, budget):
    divs = _divisors(B)
    fitting = [dv for dv in divs
               if _resident_bytes(dv, lt, P, cin, cout, k, sz_in, sz_out, sz_c, has_ds) <= budget]
    bb = max(fitting) if fitting else 1
    if B >= 2:
        # keep >= 2 steps on the "parallel" batch axis so megacore (v7x: 2 TCs) can shard it
        cap = max(1, B // 2)
        bb = max(dv for dv in divs if dv <= min(bb, cap))
    return bb


# -------------------------------------------------------------------------------- wrappers
def temporal_block_pallas_tm(x_blc, params, *, kernel_size, stride, dilation, padding,
                             compute_dtype=jnp.float32, out_dtype=None,
                             batch_block=None, time_block=None, time_block_target=256,
                             fuse_taps=None, vmem_budget_bytes=24 * 2**20):
    """Time-major entry point: (B, L, Cin) -> (B, L, Cout); channels are lane-dense."""
    assert stride == 1, "TemporalBlock in the Raindrop encoder uses stride=1"
    assert padding == dilation * (kernel_size - 1), \
        "causal-conv residual form requires padding == dilation*(kernel_size-1)"

    B, L, Cin = x_blc.shape
    k, d, P = kernel_size, dilation, padding
    w1, b1, w2, b2, wd, bd = (params["w1"], params["b1"], params["w2"], params["b2"],
                              params["wd"], params["bd"])
    Cout = w1.shape[2]
    has_downsample = wd is not None
    assert has_downsample or Cin == Cout

    cdt = jnp.dtype(compute_dtype)
    odt = jnp.dtype(out_dtype) if out_dtype is not None else x_blc.dtype

    # ---- tiling decisions (VMEM-budgeted; Lt >= P so one halo carry suffices) ----------
    Lt = _choose_time_block(L, P, time_block_target) if time_block is None else int(time_block)
    assert L % Lt == 0, "time_block must divide L"
    assert L // Lt == 1 or Lt >= P, "time_block must be >= padding (causal halo carry)"

    if batch_block is None:
        Bb = _choose_batch_block(B, Lt, P, Cin, Cout, k, cdt.itemsize, odt.itemsize,
                                 cdt.itemsize, has_downsample, vmem_budget_bytes)
    else:
        Bb = int(batch_block)
    assert B % Bb == 0, "batch_block must divide B"

    # fuse the k dilation taps into one matmul when the lane-dim concat is 128-aligned
    fuse1 = (Cin % 128 == 0) if fuse_taps is None else bool(fuse_taps)
    fuse2 = (Cout % 128 == 0) if fuse_taps is None else bool(fuse_taps)

    # ---- operands (2-byte DMA path when compute_dtype is bf16) --------------------------
    # TODO(synk): for channel counts that are not multiples of 128, pad channels to 128 upstream
    # so output stores are lane-dense (unmasked vst); not done here to keep semantics exact.
    x_c = x_blc.astype(cdt)
    w1f = jnp.reshape(w1, (k * Cin, Cout)).astype(cdt)   # tap-major flatten (matches concat order)
    w2f = jnp.reshape(w2, (k * Cout, Cout)).astype(cdt)
    b1f = b1.astype(jnp.float32)
    b2f = b2.astype(jnp.float32)

    in_specs = [
        pl.BlockSpec((Bb, Lt, Cin), lambda i, t: (i, t, 0)),            # x tile
        pl.BlockSpec((k * Cin, Cout), lambda i, t: (0, 0)),             # w1 (constant block)
        pl.BlockSpec((1, Cout), lambda i, t: (0, 0)),                   # b1
        pl.BlockSpec((k * Cout, Cout), lambda i, t: (0, 0)),            # w2
        pl.BlockSpec((1, Cout), lambda i, t: (0, 0)),                   # b2
    ]
    args = [x_c, w1f, b1f, w2f, b2f]
    if has_downsample:
        in_specs += [pl.BlockSpec((Cin, Cout), lambda i, t: (0, 0)),    # wd (1x1 conv)
                     pl.BlockSpec((1, Cout), lambda i, t: (0, 0))]      # bd
        args += [wd.astype(cdt), bd.astype(jnp.float32)]
    # NOTE: the weight/bias blocks are revisited (constant index_map) so they are not re-DMA'd;
    # pipeline_mode=pl.Buffered(1) would additionally single-buffer them for VMEM headroom, but is
    # left at the default here for portability across Pallas versions.

    kern = functools.partial(_temporal_block_kernel, k=k, d=d, P=P, Lt=Lt,
                             has_downsample=has_downsample, fuse1=fuse1, fuse2=fuse2)

    needed = _resident_bytes(Bb, Lt, P, Cin, Cout, k, cdt.itemsize, odt.itemsize,
                             cdt.itemsize, has_downsample)
    vmem_limit = int(min(100 * 2**20, max(32 * 2**20, 2 * needed)))

    out = pl.pallas_call(
        kern,
        out_shape=jax.ShapeDtypeStruct((B, L, Cout), odt),
        grid_spec=pltpu.PrefetchScalarGridSpec(
            num_scalar_prefetch=0,
            grid=(B // Bb, L // Lt),
            in_specs=in_specs,
            out_specs=pl.BlockSpec((Bb, Lt, Cout), lambda i, t: (i, t, 0)),
            scratch_shapes=[pltpu.VMEM((Bb, Lt + P, Cin), cdt),    # causally padded x tile
                            pltpu.VMEM((Bb, Lt + P, Cout), cdt)],  # causally padded conv1 act
        ),
        compiler_params=pltpu.CompilerParams(
            dimension_semantics=("parallel", "arbitrary"),   # batch parallel; time carries halo
            vmem_limit_bytes=vmem_limit),
    )(*args)
    return out


def temporal_block_pallas(x_ncl, params, **kwargs):
    """PyTorch NCL wrapper: (B, Cin, L) -> (B, Cout, L).

    The two transposes below are full HBM passes; keep the surrounding model time-major (B, L, C)
    and call temporal_block_pallas_tm directly to drop them (~1.5-2x end-to-end for this
    memory-bound block).
    """
    x_blc = jnp.transpose(x_ncl, (0, 2, 1))
    out_blc = temporal_block_pallas_tm(x_blc, params, **kwargs)
    return jnp.transpose(out_blc, (0, 2, 1))


# ----------------------------------------------------------------------- parameter creation
def weight_norm_effective(v, g):
    """PyTorch weight_norm (dim=0): w = g * v / ||v||, norm over all dims but dim 0."""
    norm = jnp.sqrt(jnp.sum(v * v, axis=(1, 2), keepdims=True))
    return g[:, None, None] * v / norm


def make_params(key, n_inputs, n_outputs, kernel_size):
    ks = jax.random.split(key, 8)
    v1 = 0.01 * jax.random.normal(ks[0], (n_outputs, n_inputs, kernel_size), jnp.float32)
    g1 = 1.0 + 0.1 * jax.random.normal(ks[1], (n_outputs,), jnp.float32)
    b1 = 0.1 * jax.random.normal(ks[2], (n_outputs,), jnp.float32)
    v2 = 0.01 * jax.random.normal(ks[3], (n_outputs, n_outputs, kernel_size), jnp.float32)
    g2 = 1.0 + 0.1 * jax.random.normal(ks[4], (n_outputs,), jnp.float32)
    b2 = 0.1 * jax.random.normal(ks[5], (n_outputs,), jnp.float32)

    w1_oik = weight_norm_effective(v1, g1)   # (Cout, Cin, k)
    w2_oik = weight_norm_effective(v2, g2)   # (Cout, Cout, k)

    if n_inputs != n_outputs:
        wd_oik = 0.01 * jax.random.normal(ks[6], (n_outputs, n_inputs, 1), jnp.float32)
        bd = 0.1 * jax.random.normal(ks[7], (n_outputs,), jnp.float32)
        wd_k = jnp.transpose(wd_oik[:, :, 0], (1, 0))     # (Cin, Cout)
        bd_k = bd[None, :]
    else:
        wd_oik = bd = wd_k = bd_k = None

    params_kernel = {
        "w1": jnp.transpose(w1_oik, (2, 1, 0)),   # (k, Cin, Cout), tap-major
        "b1": b1[None, :],
        "w2": jnp.transpose(w2_oik, (2, 1, 0)),   # (k, Cout, Cout)
        "b2": b2[None, :],
        "wd": wd_k,
        "bd": bd_k,
    }
    params_torch = {"w1": w1_oik, "b1": b1, "w2": w2_oik, "b2": b2, "wd": wd_oik, "bd": bd}
    return params_kernel, params_torch


# ----------------------------------------------------------------------------- reference ---
def conv1d_ncl(x, w_oik, b, stride, padding, dilation):
    y = jax.lax.conv_general_dilated(
        x, w_oik, window_strides=(stride,), padding=[(padding, padding)],
        rhs_dilation=(dilation,), dimension_numbers=("NCH", "OIH", "NCH"))
    return y + b[None, :, None]


def temporal_block_ref(x_ncl, p, *, kernel_size, stride, dilation, padding):
    h = conv1d_ncl(x_ncl, p["w1"], p["b1"], stride, padding, dilation)
    h = h[:, :, :-padding]                      # Chomp1d
    h = jnp.maximum(h, 0.0)                     # ReLU (dropout: identity in eval)
    h = conv1d_ncl(h, p["w2"], p["b2"], stride, padding, dilation)
    h = h[:, :, :-padding]
    h = jnp.maximum(h, 0.0)
    res = x_ncl if p["wd"] is None else conv1d_ncl(x_ncl, p["wd"], p["bd"], 1, 0, 1)
    return jnp.maximum(h + res, 0.0)


# ----------------------------------------------------------------------------------- main --
if __name__ == "__main__":
    key = jax.random.PRNGKey(0)
    kx, kp, kp2, kp3, kx2 = jax.random.split(key, 5)

    B, Cin, Cout, L = 2, 4, 8, 16
    kernel_size, stride, dilation = 3, 1, 2
    padding = (kernel_size - 1) * dilation      # = 4, standard TCN causal padding
    cfg = dict(kernel_size=kernel_size, stride=stride, dilation=dilation, padding=padding)

    # ---- case 1: downsample residual, f32, single time tile ------------------------------
    x = jax.random.normal(kx, (B, Cin, L), jnp.float32)           # PyTorch NCL layout
    pk, pt = make_params(kp, Cin, Cout, kernel_size)
    ref = temporal_block_ref(x, pt, **cfg)
    out = jax.block_until_ready(temporal_block_pallas(x, pk, **cfg))
    assert out.shape == (B, Cout, L)
    assert jnp.allclose(out, ref, atol=5e-3, rtol=5e-3), "case1: f32 single-tile mismatch"

    # ---- case 2: same, time-tiled (Lt=8 -> 2 tiles, causal halo carried in VMEM) ---------
    out_t = jax.block_until_ready(temporal_block_pallas(x, pk, time_block=8, **cfg))
    assert jnp.allclose(out_t, ref, atol=5e-3, rtol=5e-3), "case2: time-tiled mismatch"

    # ---- case 3: bf16 MXU + 2-byte DMA path, f32 accumulation -----------------------------
    out_bf = jax.block_until_ready(
        temporal_block_pallas(x, pk, time_block=8, compute_dtype=jnp.bfloat16, **cfg))
    assert jnp.allclose(out_bf, ref, atol=5e-2, rtol=5e-2), "case3: bf16 mismatch"

    # ---- case 4: identity residual (Cin == Cout, no downsample operands) ------------------
    x2 = jax.random.normal(kx2, (B, Cout, L), jnp.float32)
    pk2, pt2 = make_params(kp2, Cout, Cout, kernel_size)
    ref2 = temporal_block_ref(x2, pt2, **cfg)
    out2 = jax.block_until_ready(temporal_block_pallas(x2, pk2, time_block=8, **cfg))
    assert jnp.allclose(out2, ref2, atol=5e-3, rtol=5e-3), "case4: identity-residual mismatch"

    # ---- case 5: lane-aligned channels (128) -> fused-tap (im2col-lite) path --------------
    C = 128
    x3 = jax.random.normal(kx, (B, C, L), jnp.float32)
    pk3, pt3 = make_params(kp3, C, C, kernel_size)
    ref3 = temporal_block_ref(x3, pt3, **cfg)
    out3 = jax.block_until_ready(temporal_block_pallas(x3, pk3, **cfg))
    assert out3.shape == (B, C, L)
    assert jnp.allclose(out3, ref3, atol=3e-2, rtol=3e-2), "case5: fused-tap mismatch"

    print("KERNEL_OK")
</pallas_src>

<mosaic_0001>
module attributes {stable_mosaic.version = 11 : i64} {
  func.func @_temporal_block_kernel(%arg0: i32, %arg1: i32, %arg2: memref<1x16x4xf32, #tpu.memory_space<vmem>>, %arg3: memref<12x8xf32, #tpu.memory_space<vmem>>, %arg4: memref<1x8xf32, #tpu.memory_space<vmem>>, %arg5: memref<24x8xf32, #tpu.memory_space<vmem>>, %arg6: memref<1x8xf32, #tpu.memory_space<vmem>>, %arg7: memref<4x8xf32, #tpu.memory_space<vmem>>, %arg8: memref<1x8xf32, #tpu.memory_space<vmem>>, %arg9: memref<1x16x8xf32, #tpu.memory_space<vmem>>, %arg10: memref<1x20x4xf32, #tpu.memory_space<vmem>>, %arg11: memref<1x20x8xf32, #tpu.memory_space<vmem>>) attributes {dimension_semantics = [#tpu.dimension_semantics<parallel>, #tpu.dimension_semantics<arbitrary>], iteration_bounds = array<i64: 2, 1>, scalar_prefetch = 0 : i64, scratch_operands = 2 : i64, tpu.core_type = #tpu.core_type<tc>, window_params = [{transform_indices = @transform_0, window_bounds = array<i64: 1, 16, 4>}, {pipeline_mode = #tpu.pipeline_mode<synchronous>, transform_indices = @transform_1, window_bounds = array<i64: 12, 8>}, {pipeline_mode = #tpu.pipeline_mode<synchronous>, transform_indices = @transform_2, window_bounds = array<i64: 1, 8>}, {pipeline_mode = #tpu.pipeline_mode<synchronous>, transform_indices = @transform_3, window_bounds = array<i64: 24, 8>}, {pipeline_mode = #tpu.pipeline_mode<synchronous>, transform_indices = @transform_4, window_bounds = array<i64: 1, 8>}, {pipeline_mode = #tpu.pipeline_mode<synchronous>, transform_indices = @transform_5, window_bounds = array<i64: 4, 8>}, {pipeline_mode = #tpu.pipeline_mode<synchronous>, transform_indices = @transform_6, window_bounds = array<i64: 1, 8>}, {transform_indices = @transform_7, window_bounds = array<i64: 1, 16, 8>}]} {
    %c0_i32 = arith.constant 0 : i32
    %0 = arith.cmpi eq, %arg1, %c0_i32 : i32
    %1 = arith.extui %0 : i1 to i32
    %c0_i32_0 = arith.constant 0 : i32
    %2 = arith.cmpi ne, %1, %c0_i32_0 : i32
    scf.if %2 {
      %cst_60 = arith.constant 0.000000e+00 : f32
      %69 = vector.broadcast %cst_60 : f32 to vector<1x4x4xf32>
      %c0_61 = arith.constant 0 : index
      %c0_62 = arith.constant 0 : index
      %c0_63 = arith.constant 0 : index
      %70 = vector.load %arg10[%c0_61, %c0_62, %c0_63] : memref<1x20x4xf32, #tpu.memory_space<vmem>>, vector<1x4x4xf32>
      tpu.vector_store %arg10[%c0_61, %c0_62, %c0_63], %69 {strides = array<i32>} : memref<1x20x4xf32, #tpu.memory_space<vmem>>, vector<1x4x4xf32>,
      %cst_64 = arith.constant 0.000000e+00 : f32
      %71 = vector.broadcast %cst_64 : f32 to vector<1x4x8xf32>
      %c0_65 = arith.constant 0 : index
      %c0_66 = arith.constant 0 : index
      %c0_67 = arith.constant 0 : index
      %72 = vector.load %arg11[%c0_65, %c0_66, %c0_67] : memref<1x20x8xf32, #tpu.memory_space<vmem>>, vector<1x4x8xf32>
      tpu.vector_store %arg11[%c0_65, %c0_66, %c0_67], %71 {strides = array<i32>} : memref<1x20x8xf32, #tpu.memory_space<vmem>>, vector<1x4x8xf32>,
    } else {
    }
    %c0 = arith.constant 0 : index
    %c0_1 = arith.constant 0 : index
    %c0_2 = arith.constant 0 : index
    %3 = vector.load %arg2[%c0, %c0_1, %c0_2] : memref<1x16x4xf32, #tpu.memory_space<vmem>>, vector<1x16x4xf32>
    %c0_3 = arith.constant 0 : index
    %c4 = arith.constant 4 : index
    %c0_4 = arith.constant 0 : index
    %4 = vector.load %arg10[%c0_3, %c4, %c0_4] : memref<1x20x4xf32, #tpu.memory_space<vmem>>, vector<1x16x4xf32>
    tpu.vector_store %arg10[%c0_3, %c4, %c0_4], %3 {strides = array<i32>} : memref<1x20x4xf32, #tpu.memory_space<vmem>>, vector<1x16x4xf32>,
    %c0_5 = arith.constant 0 : index
    %c0_6 = arith.constant 0 : index
    %5 = vector.load %arg4[%c0_5, %c0_6] : memref<1x8xf32, #tpu.memory_space<vmem>>, vector<1x8xf32>
    %c0_7 = arith.constant 0 : index
    %c0_8 = arith.constant 0 : index
    %6 = vector.load %arg6[%c0_7, %c0_8] : memref<1x8xf32, #tpu.memory_space<vmem>>, vector<1x8xf32>
    %c0_9 = arith.constant 0 : index
    %c0_10 = arith.constant 0 : index
    %c0_11 = arith.constant 0 : index
    %7 = vector.load %arg10[%c0_9, %c0_10, %c0_11] : memref<1x20x4xf32, #tpu.memory_space<vmem>>, vector<1x16x4xf32>
    %c0_12 = arith.constant 0 : index
    %c0_13 = arith.constant 0 : index
    %8 = vector.load %arg3[%c0_12, %c0_13] : memref<12x8xf32, #tpu.memory_space<vmem>>, vector<4x8xf32>
    %9 = vector.shape_cast %7 : vector<1x16x4xf32> to vector<16x4xf32>
    %cst = arith.constant dense<0.000000e+00> : vector<16x8xf32>
    %10 = tpu.matmul %9, %8, %cst {dimension_numbers = #tpu.dot_dimension_numbers<[1], [0], [0], [1], [0, 0, 1, 1], [], []>} : vector<16x4xf32>, vector<4x8xf32>, vector<16x8xf32> -> vector<16x8xf32>
    %11 = vector.shape_cast %10 : vector<16x8xf32> to vector<1x16x8xf32>
    %c0_14 = arith.constant 0 : index
    %c2 = arith.constant 2 : index
    %c0_15 = arith.constant 0 : index
    %12 = vector.load %arg10[%c0_14, %c2, %c0_15] : memref<1x20x4xf32, #tpu.memory_space<vmem>>, vector<1x16x4xf32>
    %c4_16 = arith.constant 4 : index
    %c0_17 = arith.constant 0 : index
    %13 = vector.load %arg3[%c4_16, %c0_17] : memref<12x8xf32, #tpu.memory_space<vmem>>, vector<4x8xf32>
    %14 = vector.shape_cast %12 : vector<1x16x4xf32> to vector<16x4xf32>
    %cst_18 = arith.constant dense<0.000000e+00> : vector<16x8xf32>
    %15 = tpu.matmul %14, %13, %cst_18 {dimension_numbers = #tpu.dot_dimension_numbers<[1], [0], [0], [1], [0, 0, 1, 1], [], []>} : vector<16x4xf32>, vector<4x8xf32>, vector<16x8xf32> -> vector<16x8xf32>
    %16 = vector.shape_cast %15 : vector<16x8xf32> to vector<1x16x8xf32>
    %17 = arith.addf %11, %16 : vector<1x16x8xf32>
    %c0_19 = arith.constant 0 : index
    %c4_20 = arith.constant 4 : index
    %c0_21 = arith.constant 0 : index
    %18 = vector.load %arg10[%c0_19, %c4_20, %c0_21] : memref<1x20x4xf32, #tpu.memory_space<vmem>>, vector<1x16x4xf32>
    %c8 = arith.constant 8 : index
    %c0_22 = arith.constant 0 : index
    %19 = vector.load %arg3[%c8, %c0_22] : memref<12x8xf32, #tpu.memory_space<vmem>>, vector<4x8xf32>
    %20 = vector.shape_cast %18 : vector<1x16x4xf32> to vector<16x4xf32>
    %cst_23 = arith.constant dense<0.000000e+00> : vector<16x8xf32>
    %21 = tpu.matmul %20, %19, %cst_23 {dimension_numbers = #tpu.dot_dimension_numbers<[1], [0], [0], [1], [0, 0, 1, 1], [], []>} : vector<16x4xf32>, vector<4x8xf32>, vector<16x8xf32> -> vector<16x8xf32>
    %22 = vector.shape_cast %21 : vector<16x8xf32> to vector<1x16x8xf32>
    %23 = arith.addf %17, %22 : vector<1x16x8xf32>
    %24 = vector.shape_cast %5 : vector<1x8xf32> to vector<1x1x8xf32>
    %25 = vector.broadcast %24 : vector<1x1x8xf32> to vector<1x16x8xf32>
    %26 = arith.addf %23, %25 : vector<1x16x8xf32>
    %cst_24 = arith.constant 0.000000e+00 : f32
    %27 = vector.broadcast %cst_24 : f32 to vector<1x16x8xf32>
    %28 = arith.maximumf %26, %27 : vector<1x16x8xf32>
    %c0_25 = arith.constant 0 : index
    %c4_26 = arith.constant 4 : index
    %c0_27 = arith.constant 0 : index
    %29 = vector.load %arg11[%c0_25, %c4_26, %c0_27] : memref<1x20x8xf32, #tpu.memory_space<vmem>>, vector<1x16x8xf32>
    tpu.vector_store %arg11[%c0_25, %c4_26, %c0_27], %28 {strides = array<i32>} : memref<1x20x8xf32, #tpu.memory_space<vmem>>, vector<1x16x8xf32>,
    %c0_28 = arith.constant 0 : index
    %c0_29 = arith.constant 0 : index
    %c0_30 = arith.constant 0 : index
    %30 = vector.load %arg11[%c0_28, %c0_29, %c0_30] : memref<1x20x8xf32, #tpu.memory_space<vmem>>, vector<1x16x8xf32>
    %c0_31 = arith.constant 0 : index
    %c0_32 = arith.constant 0 : index
    %31 = vector.load %arg5[%c0_31, %c0_32] : memref<24x8xf32, #tpu.memory_space<vmem>>, vector<8x8xf32>
    %32 = vector.shape_cast %30 : vector<1x16x8xf32> to vector<16x8xf32>
    %cst_33 = arith.constant dense<0.000000e+00> : vector<16x8xf32>
    %33 = tpu.matmul %32, %31, %cst_33 {dimension_numbers = #tpu.dot_dimension_numbers<[1], [0], [0], [1], [0, 0, 1, 1], [], []>} : vector<16x8xf32>, vector<8x8xf32>, vector<16x8xf32> -> vector<16x8xf32>
    %34 = vector.shape_cast %33 : vector<16x8xf32> to vector<1x16x8xf32>
    %c0_34 = arith.constant 0 : index
    %c2_35 = arith.constant 2 : index
    %c0_36 = arith.constant 0 : index
    %35 = vector.load %arg11[%c0_34, %c2_35, %c0_36] : memref<1x20x8xf32, #tpu.memory_space<vmem>>, vector<1x16x8xf32>
    %c8_37 = arith.constant 8 : index
    %c0_38 = arith.constant 0 : index
    %36 = vector.load %arg5[%c8_37, %c0_38] : memref<24x8xf32, #tpu.memory_space<vmem>>, vector<8x8xf32>
    %37 = vector.shape_cast %35 : vector<1x16x8xf32> to vector<16x8xf32>
    %cst_39 = arith.constant dense<0.000000e+00> : vector<16x8xf32>
    %38 = tpu.matmul %37, %36, %cst_39 {dimension_numbers = #tpu.dot_dimension_numbers<[1], [0], [0], [1], [0, 0, 1, 1], [], []>} : vector<16x8xf32>, vector<8x8xf32>, vector<16x8xf32> -> vector<16x8xf32>
    %39 = vector.shape_cast %38 : vector<16x8xf32> to vector<1x16x8xf32>
    %40 = arith.addf %34, %39 : vector<1x16x8xf32>
    %c0_40 = arith.constant 0 : index
    %c4_41 = arith.constant 4 : index
    %c0_42 = arith.constant 0 : index
    %41 = vector.load %arg11[%c0_40, %c4_41, %c0_42] : memref<1x20x8xf32, #tpu.memory_space<vmem>>, vector<1x16x8xf32>
    %c16 = arith.constant 16 : index
    %c0_43 = arith.constant 0 : index
    %42 = vector.load %arg5[%c16, %c0_43] : memref<24x8xf32, #tpu.memory_space<vmem>>, vector<8x8xf32>
    %43 = vector.shape_cast %41 : vector<1x16x8xf32> to vector<16x8xf32>
    %cst_44 = arith.constant dense<0.000000e+00> : vector<16x8xf32>
    %44 = tpu.matmul %43, %42, %cst_44 {dimension_numbers = #tpu.dot_dimension_numbers<[1], [0], [0], [1], [0, 0, 1, 1], [], []>} : vector<16x8xf32>, vector<8x8xf32>, vector<16x8xf32> -> vector<16x8xf32>
    %45 = vector.shape_cast %44 : vector<16x8xf32> to vector<1x16x8xf32>
    %46 = arith.addf %40, %45 : vector<1x16x8xf32>
    %47 = vector.shape_cast %6 : vector<1x8xf32> to vector<1x1x8xf32>
    %48 = vector.broadcast %47 : vector<1x1x8xf32> to vector<1x16x8xf32>
    %49 = arith.addf %46, %48 : vector<1x16x8xf32>
    %cst_45 = arith.constant 0.000000e+00 : f32
    %50 = vector.broadcast %cst_45 : f32 to vector<1x16x8xf32>
    %51 = arith.maximumf %49, %50 : vector<1x16x8xf32>
    %c0_46 = arith.constant 0 : index
    %c0_47 = arith.constant 0 : index
    %c0_48 = arith.constant 0 : index
    %52 = vector.load %arg2[%c0_46, %c0_47, %c0_48] : memref<1x16x4xf32, #tpu.memory_space<vmem>>, vector<1x16x4xf32>
    %c0_49 = arith.constant 0 : index
    %c0_50 = arith.constant 0 : index
    %53 = vector.load %arg7[%c0_49, %c0_50] : memref<4x8xf32, #tpu.memory_space<vmem>>, vector<4x8xf32>
    %54 = vector.shape_cast %52 : vector<1x16x4xf32> to vector<16x4xf32>
    %cst_51 = arith.constant dense<0.000000e+00> : vector<16x8xf32>
    %55 = tpu.matmul %54, %53, %cst_51 {dimension_numbers = #tpu.dot_dimension_numbers<[1], [0], [0], [1], [0, 0, 1, 1], [], []>} : vector<16x4xf32>, vector<4x8xf32>, vector<16x8xf32> -> vector<16x8xf32>
    %56 = vector.shape_cast %55 : vector<16x8xf32> to vector<1x16x8xf32>
    %c0_52 = arith.constant 0 : index
    %c0_53 = arith.constant 0 : index
    %57 = vector.load %arg8[%c0_52, %c0_53] : memref<1x8xf32, #tpu.memory_space<vmem>>, vector<1x8xf32>
    %58 = vector.shape_cast %57 : vector<1x8xf32> to vector<1x1x8xf32>
    %59 = vector.broadcast %58 : vector<1x1x8xf32> to vector<1x16x8xf32>
    %60 = arith.addf %56, %59 : vector<1x16x8xf32>
    %61 = arith.addf %51, %60 : vector<1x16x8xf32>
    %cst_54 = arith.constant 0.000000e+00 : f32
    %62 = vector.broadcast %cst_54 : f32 to vector<1x16x8xf32>
    %63 = arith.maximumf %61, %62 : vector<1x16x8xf32>
    %c0_55 = arith.constant 0 : index
    %c0_56 = arith.constant 0 : index
    %c0_57 = arith.constant 0 : index
    %64 = vector.load %arg9[%c0_55, %c0_56, %c0_57] : memref<1x16x8xf32, #tpu.memory_space<vmem>>, vector<1x16x8xf32>
    tpu.vector_store %arg9[%c0_55, %c0_56, %c0_57], %63 {strides = array<i32>} : memref<1x16x8xf32, #tpu.memory_space<vmem>>, vector<1x16x8xf32>,
    %c1_i32 = arith.constant 1 : i32
    %65 = arith.addi %arg1, %c1_i32 : i32
    %c1_i32_58 = arith.constant 1 : i32
    %66 = arith.cmpi slt, %65, %c1_i32_58 : i32
    %67 = arith.extui %66 : i1 to i32
    %c0_i32_59 = arith.constant 0 : i32
    %68 = arith.cmpi ne, %67, %c0_i32_59 : i32
    scf.if %68 {
      %c0_60 = arith.constant 0 : index
      %c16_61 = arith.constant 16 : index
      %c0_62 = arith.constant 0 : index
      %69 = vector.load %arg10[%c0_60, %c16_61, %c0_62] : memref<1x20x4xf32, #tpu.memory_space<vmem>>, vector<1x4x4xf32>
      %c0_63 = arith.constant 0 : index
      %c0_64 = arith.constant 0 : index
      %c0_65 = arith.constant 0 : index
      %70 = vector.load %arg10[%c0_63, %c0_64, %c0_65] : memref<1x20x4xf32, #tpu.memory_space<vmem>>, vector<1x4x4xf32>
      tpu.vector_store %arg10[%c0_63, %c0_64, %c0_65], %69 {strides = array<i32>} : memref<1x20x4xf32, #tpu.memory_space<vmem>>, vector<1x4x4xf32>,
      %c0_66 = arith.constant 0 : index
      %c16_67 = arith.constant 16 : index
      %c0_68 = arith.constant 0 : index
      %71 = vector.load %arg11[%c0_66, %c16_67, %c0_68] : memref<1x20x8xf32, #tpu.memory_space<vmem>>, vector<1x4x8xf32>
      %c0_69 = arith.constant 0 : index
      %c0_70 = arith.constant 0 : index
      %c0_71 = arith.constant 0 : index
      %72 = vector.load %arg11[%c0_69, %c0_70, %c0_71] : memref<1x20x8xf32, #tpu.memory_space<vmem>>, vector<1x4x8xf32>
      tpu.vector_store %arg11[%c0_69, %c0_70, %c0_71], %71 {strides = array<i32>} : memref<1x20x8xf32, #tpu.memory_space<vmem>>, vector<1x4x8xf32>,
    } else {
    }
    return
  }
  func.func @transform_0(%arg0: i32, %arg1: i32) -> (i32, i32, i32) {
    %c0_i32 = arith.constant 0 : i32
    %c0_i32_0 = arith.constant 0 : i32
    return %arg0, %arg1, %c0_i32 : i32, i32, i32
  }
  func.func @transform_1(%arg0: i32, %arg1: i32) -> (i32, i32) {
    %c0_i32 = arith.constant 0 : i32
    %c0_i32_0 = arith.constant 0 : i32
    %c0_i32_1 = arith.constant 0 : i32
    return %c0_i32, %c0_i32_0 : i32, i32
  }
  func.func @transform_2(%arg0: i32, %arg1: i32) -> (i32, i32) {
    %c0_i32 = arith.constant 0 : i32
    %c0_i32_0 = arith.constant 0 : i32
    %c0_i32_1 = arith.constant 0 : i32
    return %c0_i32, %c0_i32_0 : i32, i32
  }
  func.func @transform_3(%arg0: i32, %arg1: i32) -> (i32, i32) {
    %c0_i32 = arith.constant 0 : i32
    %c0_i32_0 = arith.constant 0 : i32
    %c0_i32_1 = arith.constant 0 : i32
    return %c0_i32, %c0_i32_0 : i32, i32
  }
  func.func @transform_4(%arg0: i32, %arg1: i32) -> (i32, i32) {
    %c0_i32 = arith.constant 0 : i32
    %c0_i32_0 = arith.constant 0 : i32
    %c0_i32_1 = arith.constant 0 : i32
    return %c0_i32, %c0_i32_0 : i32, i32
  }
  func.func @transform_5(%arg0: i32, %arg1: i32) -> (i32, i32) {
    %c0_i32 = arith.constant 0 : i32
    %c0_i32_0 = arith.constant 0 : i32
    %c0_i32_1 = arith.constant 0 : i32
    return %c0_i32, %c0_i32_0 : i32, i32
  }
  func.func @transform_6(%arg0: i32, %arg1: i32) -> (i32, i32) {
    %c0_i32 = arith.constant 0 : i32
    %c0_i32_0 = arith.constant 0 : i32
    %c0_i32_1 = arith.constant 0 : i32
    return %c0_i32, %c0_i32_0 : i32, i32
  }
  func.func @transform_7(%arg0: i32, %arg1: i32) -> (i32, i32, i32) {
    %c0_i32 = arith.constant 0 : i32
    %c0_i32_0 = arith.constant 0 : i32
    return %arg0, %arg1, %c0_i32 : i32, i32, i32
  }
}

</mosaic_0001>

<llo_original>
// kernel: tpu_custom_call.1
$region0: #{tpu_custom_call.1}
  #allocation0 [shape = 'u32[]', space=smem, size = 0x4, offset = 0x4, fixed_abs, tag = 'smem constant byte address 0x4 - core index']
  #allocation1 [shape = 'u32[144,128]{1,0:T(1,128)}', space=vmem, size = 0x12000, scoped, tag = 'internal scratch']
  #allocation2 [shape = 'f32[1,20,4]{2,1,0:T(8,128)}', space=vmem, size = 0x3000, scoped, tag = 'scratch operand']
  #allocation3 [shape = 'f32[1,20,8]{2,1,0:T(8,128)}', space=vmem, size = 0x3000, scoped, tag = 'scratch operand']
  %s0 = inlined_call_operand.vmem [shape: f32[2,16,4], index: 0, kind: input, shape index: {}]
  %s1 = inlined_call_operand.vmem [shape: f32[12,8], index: 1, kind: input, shape index: {}]
  %s2 = inlined_call_operand.vmem [shape: f32[1,8], index: 2, kind: input, shape index: {}]
  %s3 = inlined_call_operand.vmem [shape: f32[24,8], index: 3, kind: input, shape index: {}]
  %s4 = inlined_call_operand.vmem [shape: f32[1,8], index: 4, kind: input, shape index: {}]
  %s5 = inlined_call_operand.vmem [shape: f32[4,8], index: 5, kind: input, shape index: {}]
  %s6 = inlined_call_operand.vmem [shape: f32[1,8], index: 6, kind: input, shape index: {}]
  %s7 = inlined_call_operand.vmem [shape: f32[2,16,8], index: 7, kind: output, shape index: {}]
  %s8 = sld [smem:[#allocation0]]
  $region69: #{tpu_custom_call.1} parent=0
    _
  %s10 = ssub.s32 1, %s8
  %s11 = scalar_select 0, %s10, %s8
  loop: start=0, step=1, limit=4
  $region2: #{tpu_custom_call.1} parent=0 // loop_pre_header
    _
  $region3: #{tpu_custom_call.1} parent=0 // loop_header
    %s13 = sphi 0, %s17
    %p14 = scmp.ge.s32.totalorder %s13, 4
    %s20 = sphi 0, %s32
    %s21 = sphi 0, %s28
    %s22 = sphi 0, %s20
    %s23 = sphi 0, %s21
    %s24 = sphi 0, %s22
    %s25 = sphi 0, %s23
    %s37 = sphi 0, %s39
    %s40 = sphi 0, %s37
    %s41 = sphi 0, %s40
    %s57 = sphi 0, %s41
    %s61 = sphi 0, %s61
    %s63 = sphi 0, %s61
    %s64 = sphi 0, %s63
    %s78 = sphi 0, %s64
    %s82 = sphi 0, %s82
    %s84 = sphi 0, %s82
    %s85 = sphi 0, %s84
    %s99 = sphi 0, %s85
    %s103 = sphi 0, %s103
    %s105 = sphi 0, %s103
    %s106 = sphi 0, %s105
    %s120 = sphi 0, %s106
    %s124 = sphi 0, %s124
    %s126 = sphi 0, %s124
    %s127 = sphi 0, %s126
    %s141 = sphi 0, %s127
    %s145 = sphi 0, %s145
    %s147 = sphi 0, %s145
    %s148 = sphi 0, %s147
    %s162 = sphi 0, %s148
    %s166 = sphi 0, %s166
    %s168 = sphi 0, %s166
    %s169 = sphi 0, %s168
    %s183 = sphi 0, %s169
    %s191 = sphi 0, %s193
    %s194 = sphi 0, %s191
    %s195 = sphi 0, %s194
    %s211 = sphi 0, %s195
  $region4: #{tpu_custom_call.1} parent=0 // loop_header_branch
    %16 = sbr.rel (%p14) target = $region8
  $region5: #{tpu_custom_call.1} parent=0 // loop_body
    %s18 = ssub.s32 %s13, 1
    %s19 = ssub.s32 %s13, 2
    %s26 = sadd.s32 1, %s21
    %p27 = scmp.ge.s32.totalorder %s26, 1
    %s28 = scalar_select %p27, 0, %s26
    %s29 = sadd.s32 1, %s20
    %s30 = scalar_select %p27, %s29, %s20
    %p31 = scmp.ge.s32.totalorder %s30, 2
    %s32 = scalar_select %p31, 0, %s30
    %s33 = ssub.s32 %s20, %s32
    %s34 = ssub.s32 %s21, %s28
    %s35 = sor.u32 %s33, %s34
    %p36 = scmp.eq.s32.totalorder %s35, 0
    %s38 = sadd.s32 %s37, 1
    %s39 = scalar_select %p36, %s37, %s38
    %p42 = pneg %p36
    %p43 = scmp.eq.s32.totalorder %s13, 1
    %p44 = por %p42, %p43
    %p45 = scmp.ne.s32.totalorder %s37, %s40
    %p46 = scmp.eq.s32.totalorder %s13, 0
    %p47 = por %p45, %p46
    %p48 = scmp.ne.s32.totalorder %s37, %s40
    %p49 = scmp.eq.s32.totalorder %s18, 1
    %p50 = por %p48, %p49
    %p51 = scmp.ne.s32.totalorder %s40, %s41
    %p52 = scmp.eq.s32.totalorder %s18, 0
    %p53 = por %p51, %p52
    %p54 = scmp.ne.s32.totalorder %s40, %s41
    %p55 = scmp.eq.s32.totalorder %s19, 1
    %p56 = por %p54, %p55
    %p58 = scmp.ne.s32.totalorder %s41, %s57
    %p59 = scmp.eq.s32.totalorder %s19, 0
    %p60 = por %p58, %p59
    %s62 = sadd.s32 %s61, 1
    %p65 = scmp.eq.s32.totalorder %s13, 1
    %p66 = scmp.ne.s32.totalorder %s61, %s63
    %p67 = scmp.eq.s32.totalorder %s13, 0
    %p68 = por %p66, %p67
    %p69 = scmp.ne.s32.totalorder %s61, %s63
    %p70 = scmp.eq.s32.totalorder %s18, 1
    %p71 = por %p69, %p70
    %p72 = scmp.ne.s32.totalorder %s63, %s64
    %p73 = scmp.eq.s32.totalorder %s18, 0
    %p74 = por %p72, %p73
    %p75 = scmp.ne.s32.totalorder %s63, %s64
    %p76 = scmp.eq.s32.totalorder %s19, 1
    %p77 = por %p75, %p76
    %p79 = scmp.ne.s32.totalorder %s64, %s78
    %p80 = scmp.eq.s32.totalorder %s19, 0
    %p81 = por %p79, %p80
    %s83 = sadd.s32 %s82, 1
    %p86 = scmp.eq.s32.totalorder %s13, 1
    %p87 = scmp.ne.s32.totalorder %s82, %s84
    %p88 = scmp.eq.s32.totalorder %s13, 0
    %p89 = por %p87, %p88
    %p90 = scmp.ne.s32.totalorder %s82, %s84
    %p91 = scmp.eq.s32.totalorder %s18, 1
    %p92 = por %p90, %p91
    %p93 = scmp.ne.s32.totalorder %s84, %s85
    %p94 = scmp.eq.s32.totalorder %s18, 0
    %p95 = por %p93, %p94
    %p96 = scmp.ne.s32.totalorder %s84, %s85
    %p97 = scmp.eq.s32.totalorder %s19, 1
    %p98 = por %p96, %p97
    %p100 = scmp.ne.s32.totalorder %s85, %s99
    %p101 = scmp.eq.s32.totalorder %s19, 0
    %p102 = por %p100, %p101
    %s104 = sadd.s32 %s103, 1
    %p107 = scmp.eq.s32.totalorder %s13, 1
    %p108 = scmp.ne.s32.totalorder %s103, %s105
    %p109 = scmp.eq.s32.totalorder %s13, 0
    %p110 = por %p108, %p109
    %p111 = scmp.ne.s32.totalorder %s103, %s105
    %p112 = scmp.eq.s32.totalorder %s18, 1
    %p113 = por %p111, %p112
    %p114 = scmp.ne.s32.totalorder %s105, %s106
    %p115 = scmp.eq.s32.totalorder %s18, 0
    %p116 = por %p114, %p115
    %p117 = scmp.ne.s32.totalorder %s105, %s106
    %p118 = scmp.eq.s32.totalorder %s19, 1
    %p119 = por %p117, %p118
    %p121 = scmp.ne.s32.totalorder %s106, %s120
    %p122 = scmp.eq.s32.totalorder %s19, 0
    %p123 = por %p121, %p122
    %s125 = sadd.s32 %s124, 1
    %p128 = scmp.eq.s32.totalorder %s13, 1
    %p129 = scmp.ne.s32.totalorder %s124, %s126
    %p130 = scmp.eq.s32.totalorder %s13, 0
    %p131 = por %p129, %p130
    %p132 = scmp.ne.s32.totalorder %s124, %s126
    %p133 = scmp.eq.s32.totalorder %s18, 1
    %p134 = por %p132, %p133
    %p135 = scmp.ne.s32.totalorder %s126, %s127
    %p136 = scmp.eq.s32.totalorder %s18, 0
    %p137 = por %p135, %p136
    %p138 = scmp.ne.s32.totalorder %s126, %s127
    %p139 = scmp.eq.s32.totalorder %s19, 1
    %p140 = por %p138, %p139
    %p142 = scmp.ne.s32.totalorder %s127, %s141
    %p143 = scmp.eq.s32.totalorder %s19, 0
    %p144 = por %p142, %p143
    %s146 = sadd.s32 %s145, 1
    %p149 = scmp.eq.s32.totalorder %s13, 1
    %p150 = scmp.ne.s32.totalorder %s145, %s147
    %p151 = scmp.eq.s32.totalorder %s13, 0
    %p152 = por %p150, %p151
    %p153 = scmp.ne.s32.totalorder %s145, %s147
    %p154 = scmp.eq.s32.totalorder %s18, 1
    %p155 = por %p153, %p154
    %p156 = scmp.ne.s32.totalorder %s147, %s148
    %p157 = scmp.eq.s32.totalorder %s18, 0
    %p158 = por %p156, %p157
    %p159 = scmp.ne.s32.totalorder %s147, %s148
    %p160 = scmp.eq.s32.totalorder %s19, 1
    %p161 = por %p159, %p160
    %p163 = scmp.ne.s32.totalorder %s148, %s162
    %p164 = scmp.eq.s32.totalorder %s19, 0
    %p165 = por %p163, %p164
    %s167 = sadd.s32 %s166, 1
    %p170 = scmp.eq.s32.totalorder %s13, 1
    %p171 = scmp.ne.s32.totalorder %s166, %s168
    %p172 = scmp.eq.s32.totalorder %s13, 0
    %p173 = por %p171, %p172
    %p174 = scmp.ne.s32.totalorder %s166, %s168
    %p175 = scmp.eq.s32.totalorder %s18, 1
    %p176 = por %p174, %p175
    %p177 = scmp.ne.s32.totalorder %s168, %s169
    %p178 = scmp.eq.s32.totalorder %s18, 0
    %p179 = por %p177, %p178
    %p180 = scmp.ne.s32.totalorder %s168, %s169
    %p181 = scmp.eq.s32.totalorder %s19, 1
    %p182 = por %p180, %p181
    %p184 = scmp.ne.s32.totalorder %s169, %s183
    %p185 = scmp.eq.s32.totalorder %s19, 0
    %p186 = por %p184, %p185
    %s187 = ssub.s32 %s20, %s32
    %s188 = ssub.s32 %s21, %s28
    %s189 = sor.u32 %s187, %s188
    %p190 = scmp.eq.s32.totalorder %s189, 0
    %s192 = sadd.s32 %s191, 1
    %s193 = scalar_select %p190, %s191, %s192
    %p196 = pneg %p190
    %p197 = scmp.eq.s32.totalorder %s13, 1
    %p198 = por %p196, %p197
    %p199 = scmp.ne.s32.totalorder %s191, %s194
    %p200 = scmp.eq.s32.totalorder %s13, 0
    %p201 = por %p199, %p200
    %p202 = scmp.ne.s32.totalorder %s191, %s194
    %p203 = scmp.eq.s32.totalorder %s18, 1
    %p204 = por %p202, %p203
    %p205 = scmp.ne.s32.totalorder %s194, %s195
    %p206 = scmp.eq.s32.totalorder %s18, 0
    %p207 = por %p205, %p206
    %p208 = scmp.ne.s32.totalorder %s194, %s195
    %p209 = scmp.eq.s32.totalorder %s19, 1
    %p210 = por %p208, %p209
    %p212 = scmp.ne.s32.totalorder %s195, %s211
    %p213 = scmp.eq.s32.totalorder %s19, 0
    %p214 = por %p212, %p213
    %p215 = scmp.le.s32.totalorder 1, %s13
    %p216 = scmp.lt.s32.totalorder %s13, 3
    %p217 = pnand %p215, %p216
    %p218 = pneg %p217
    // Predicated region
    $region9: #{tpu_custom_call.1} parent=5 // pred_check
      _
    $region10: #{tpu_custom_call.1} parent=5 // pred_check_branch
      %220 = sbr.rel (%p217) target = $region12
    $region11: #{tpu_custom_call.1} parent=5 // pred_region
      %s221 = ssub.s32 %s13, 1
      // Predicated region
      $region13: #{tpu_custom_call.1} parent=11 // pred_check
        %p222 = pneg %p74
      $region14: #{tpu_custom_call.1} parent=11 // pred_check_branch
        %224 = sbr.rel (%p222) target = $region16
      $region15: #{tpu_custom_call.1} parent=11 // pred_region
        _
      $region16: #{tpu_custom_call.1} parent=11 // pred_fallthru
        _
      // Predicated region
      $region17: #{tpu_custom_call.1} parent=11 // pred_check
        %p225 = pneg %p95
      $region18: #{tpu_custom_call.1} parent=11 // pred_check_branch
        %227 = sbr.rel (%p225) target = $region20
      $region19: #{tpu_custom_call.1} parent=11 // pred_region
        _
      $region20: #{tpu_custom_call.1} parent=11 // pred_fallthru
        _
      // Predicated region
      $region21: #{tpu_custom_call.1} parent=11 // pred_check
        %p228 = pneg %p116
      $region22: #{tpu_custom_call.1} parent=11 // pred_check_branch
        %230 = sbr.rel (%p228) target = $region24
      $region23: #{tpu_custom_call.1} parent=11 // pred_region
        _
      $region24: #{tpu_custom_call.1} parent=11 // pred_fallthru
        _
      // Predicated region
      $region25: #{tpu_custom_call.1} parent=11 // pred_check
        %p231 = pneg %p137
      $region26: #{tpu_custom_call.1} parent=11 // pred_check_branch
        %233 = sbr.rel (%p231) target = $region28
      $region27: #{tpu_custom_call.1} parent=11 // pred_region
        _
      $region28: #{tpu_custom_call.1} parent=11 // pred_fallthru
        _
      // Predicated region
      $region29: #{tpu_custom_call.1} parent=11 // pred_check
        %p234 = pneg %p158
      $region30: #{tpu_custom_call.1} parent=11 // pred_check_branch
        %236 = sbr.rel (%p234) target = $region32
      $region31: #{tpu_custom_call.1} parent=11 // pred_region
        _
      $region32: #{tpu_custom_call.1} parent=11 // pred_fallthru
        _
      // Predicated region
      $region33: #{tpu_custom_call.1} parent=11 // pred_check
        %p237 = pneg %p179
      $region34: #{tpu_custom_call.1} parent=11 // pred_check_branch
        %239 = sbr.rel (%p237) target = $region36
      $region35: #{tpu_custom_call.1} parent=11 // pred_region
        _
      $region36: #{tpu_custom_call.1} parent=11 // pred_fallthru
        _
    $region12: #{tpu_custom_call.1} parent=5 // pred_fallthru
      _
    %p240 = scmp.lt.s32.totalorder %s13, 2
    // Predicated region
    $region37: #{tpu_custom_call.1} parent=5 // pred_check
      %p241 = pneg %p240
    $region38: #{tpu_custom_call.1} parent=5 // pred_check_branch
      %243 = sbr.rel (%p241) target = $region40
    $region39: #{tpu_custom_call.1} parent=5 // pred_region
      // Predicated region
      $region41: #{tpu_custom_call.1} parent=39 // pred_check
        %p244 = pneg %p47
      $region42: #{tpu_custom_call.1} parent=39 // pred_check_branch
        %246 = sbr.rel (%p244) target = $region44
      $region43: #{tpu_custom_call.1} parent=39 // pred_region
        %s247 = smul.u32 2, %s21
        %p248 = scmp.lt.s32.totalorder %s20, 1
        %s249 = scalar_select %p248, %s20, 1
        %p250 = scmp.lt.s32.totalorder %s247, 1
        %s251 = scalar_select %p250, %s247, 1
        %s252 = smul.addr %s249, 2
        %s253 = sadd.s32 %s251, %s252
        %s254 = smul.addr %s253, 8
        %s255 = scalar_lea.vmem %s0, %s254
        %s256 = smul.u32 2, %s21
      $region44: #{tpu_custom_call.1} parent=39 // pred_fallthru
        _
    $region40: #{tpu_custom_call.1} parent=5 // pred_fallthru
      _
    %p257 = scmp.le.s32.totalorder 1, %s13
    %p258 = scmp.lt.s32.totalorder %s13, 3
    %p259 = pnand %p257, %p258
    %p260 = pneg %p259
    // Predicated region
    $region45: #{tpu_custom_call.1} parent=5 // pred_check
      _
    $region46: #{tpu_custom_call.1} parent=5 // pred_check_branch
      %262 = sbr.rel (%p259) target = $region48
    $region47: #{tpu_custom_call.1} parent=5 // pred_region
      %s263 = ssub.s32 %s13, 1
      %s264 = smul.u32 2, %s23
      %p265 = scmp.lt.s32.totalorder %s22, 1
      %s266 = scalar_select %p265, %s22, 1
      %p267 = scmp.lt.s32.totalorder %s264, 1
      %s268 = scalar_select %p267, %s264, 1
      %s269 = smul.addr %s266, 2
      %s270 = sadd.s32 %s268, %s269
      %s271 = smul.addr %s270, 8
      %s272 = scalar_lea.vmem %s0, %s271
      %p273 = pneg %p53
      %p274 = pneg %p50
      %p275 = pneg %p74
      %p276 = pneg %p71
      %p277 = pneg %p95
      %p278 = pneg %p92
      %p279 = pneg %p116
      %p280 = pneg %p113
      %p281 = pneg %p137
      %p282 = pneg %p134
      %p283 = pneg %p158
      %p284 = pneg %p155
      %p285 = pneg %p179
      %p286 = pneg %p176
      %p287 = pneg %p207
      %p288 = pneg %p204
      %s289 = smul.u32 2, %s23
      %p290 = scmp.lt.s32.totalorder %s22, 1
      %s291 = scalar_select %p290, %s22, 1
      %p292 = scmp.lt.s32.totalorder %s289, 1
      %s293 = scalar_select %p292, %s289, 1
      %s294 = smul.addr %s291, 2
      %s295 = sadd.s32 %s293, %s294
      %s296 = smul.addr %s295, 8
      %s297 = scalar_lea.vmem %s7, %s296
      %s298 = smul.u32 2, %s23
      %p299 = scmp.lt.s32.totalorder %s22, 1
      %s300 = scalar_select %p299, %s22, 1
      %p301 = scmp.lt.s32.totalorder %s298, 1
      %s302 = scalar_select %p301, %s298, 1
      %s303 = smul.addr %s300, 2
      %s304 = sadd.s32 %s302, %s303
      %s305 = smul.addr %s304, 8
      %s306 = scalar_lea.vmem %s0, %s305
      %s307 = smul.u32 2, %s23
      %s308 = smul.u32 2, %s23
      %p309 = scmp.lt.s32.totalorder %s22, 1
      %s310 = scalar_select %p309, %s22, 1
      %p311 = scmp.lt.s32.totalorder %s308, 1
      %s312 = scalar_select %p311, %s308, 1
      %s313 = smul.addr %s310, 2
      %s314 = sadd.s32 %s312, %s313
      %s315 = smul.addr %s314, 8
      %s316 = scalar_lea.vmem %s7, %s315
      %s317 = smul.u32 2, %s23
      %p318 = scmp.eq.s32.totalorder %s23, 0
      // Predicated region
      $region49: #{tpu_custom_call.1} parent=47 // pred_check
        %p319 = pneg %p318
      $region50: #{tpu_custom_call.1} parent=47 // pred_check_branch
        %321 = sbr.rel (%p319) target = $region52
      $region51: #{tpu_custom_call.1} parent=47 // pred_region
        %vm322 = vcmask 27648
        %323 = vst.msk [vmem:[#allocation2] sm:$0xf] %vm322, 0.0
        %vm324 = vcmask 60416
        %325 = vst.msk [vmem:[#allocation3] sm:$0xf] %vm324, 0.0
      $region52: #{tpu_custom_call.1} parent=47 // pred_fallthru
        _
      %v326 = vld [vmem:[%s306] sm:$0xff]
      %v327 = vld [vmem:[%s306 + $0x8] sm:$0xff]
      %vm328 = vcmask 31744
      %329 = vst.msk [vmem:[#allocation2 + $0x4] sm:$0xff] %vm328, %v326
      %330 = vst.msk [vmem:[#allocation2 + $0xc] sm:$0xff] %vm328, %v327
      %v331 = vld [vmem:[%s2] sm:$0x1]
      %v332 = vld [vmem:[%s4] sm:$0x1]
      %v333 = vld [vmem:[#allocation2] sm:$0xff]
      %v334 = vld [vmem:[#allocation2 + $0x8] sm:$0xff]
      %v335 = vld [vmem:[%s1] sm:$0xf]
      %v337 = vsel %vm328, %v333, 0
      %v340 = vsel %vm328, %v334, 0
      %vm342 = vcmask 1043456
      %v344 = vsel %vm342, %v335, 0
      %346 = vmatprep.subr.mxu0 0.0
      %347 = vmatpush1.msra.mxu0 %v344
      %348 = vmatprep.subr.mxu0 0.0
      %349 = vmatpush1.msra.mxu0 0.0
      %350 = vmatprep.subr.mxu0 0.0
      %351 = vmatpush1.msra.mxu0 0.0
      %352 = vmatprep.subr.mxu0 0.0
      %353 = vmatpush1.msra.mxu0 0.0
      %354 = vmatprep.subr.mxu0 0.0
      %355 = vmatpush1.msra.mxu0 0.0
      %356 = vmatprep.subr.mxu0 0.0
      %357 = vmatpush1.msra.mxu0 0.0
      %358 = vmatprep.subr.mxu0 0.0
      %359 = vmatpush1.msra.mxu0 0.0
      %360 = vmatprep.subr.mxu0 0.0
      %361 = vmatpush1.msra.mxu0 0.0
      %362 = vmatprep.subr.mxu0 0.0
      %363 = vmatpush1.msra.mxu0 0.0
      %364 = vmatprep.subr.mxu0 0.0
      %365 = vmatpush1.msra.mxu0 0.0
      %366 = vmatprep.subr.mxu0 0.0
      %367 = vmatpush1.msra.mxu0 0.0
      %368 = vmatprep.subr.mxu0 0.0
      %369 = vmatpush1.msra.mxu0 0.0
      %370 = vmatprep.subr.mxu0 0.0
      %371 = vmatpush1.msra.mxu0 0.0
      %372 = vmatprep.subr.mxu0 0.0
      %373 = vmatpush1.msra.mxu0 0.0
      %374 = vmatprep.subr.mxu0 0.0
      %375 = vmatpush1.msra.mxu0 0.0
      %376 = vmatprep.subr.mxu0 0.0
      %377 = vmatpush1.msra.mxu0 0.0
      %378 = vmatprep.subr.mxu0 0.0
      %379 = vmatpush1.msra.mxu0 0.0
      %380 = vmatprep.subr.mxu0 0.0
      %381 = vmatpush1.msra.mxu0 0.0
      %382 = vmatprep.subr.mxu0 0.0
      %383 = vmatpush1.msra.mxu0 0.0
      %384 = vmatprep.subr.mxu0 0.0
      %385 = vmatpush1.msra.mxu0 0.0
      %386 = vmatprep.subr.mxu0 0.0
      %387 = vmatpush1.msra.mxu0 0.0
      %388 = vmatprep.subr.mxu0 0.0
      %389 = vmatpush1.msra.mxu0 0.0
      %390 = vmatprep.subr.mxu0 0.0
      %391 = vmatpush1.msra.mxu0 0.0
      %392 = vmatprep.subr.mxu0 0.0
      %393 = vmatpush1.msra.mxu0 0.0
      %394 = vmatprep.subr.mxu0 0.0
      %395 = vmatpush1.msra.mxu0 0.0
      %396 = vmatprep.subr.mxu0 0.0
      %397 = vmatpush1.msra.mxu0 0.0
      %398 = vmatprep.subr.mxu0 0.0
      %399 = vmatpush1.msra.mxu0 0.0
      %400 = vmatprep.subr.mxu0 0.0
      %401 = vmatpush1.msra.mxu0 0.0
      %402 = vmatprep.subr.mxu0 0.0
      %403 = vmatpush1.msra.mxu0 0.0
      %404 = vmatprep.subr.mxu0 0.0
      %405 = vmatpush1.msra.mxu0 0.0
      %406 = vmatprep.subr.mxu0 0.0
      %407 = vmatpush1.msra.mxu0 0.0
      %408 = vmatprep.subr.mxu0 0.0
      %409 = vmatpush1.msra.mxu0 0.0
      %410 = vmatprep.mubr.f32.mxu0 0.0
      %411 = vmatmul.mubr.f32.gmra.mrb[0].mxu0 %v337
      %v412 = vpop.f32.mrb[0].mxu0
      %v413 = vadd.f32 0.0, %v412
      %v414 = vpop.f32.mrb[0].mxu0
      %415 = vmatprep.mubr.f32.mxu0 0.0
      %416 = vmatmul.mubr.f32.gmra.mrb[0].mxu0 %v340
      %v417 = vpop.f32.mrb[0].mxu0
      %v418 = vadd.f32 0.0, %v417
      %v419 = vpop.f32.mrb[0].mxu0
      %420 = vdwg.mxu0
      %v421 = vld [vmem:[#allocation2 + $0x2] sm:$0xff]
      %v422 = vld [vmem:[#allocation2 + $0xa] sm:$0xff]
      %v423 = vld [vmem:[%s1 + $0x4] sm:$0xf]
      %v425 = vsel %vm328, %v421, 0
      %v428 = vsel %vm328, %v422, 0
      %v431 = vsel %vm342, %v423, 0
      %433 = vmatprep.subr.mxu0 0.0
      %434 = vmatpush1.msra.mxu0 %v431
      %435 = vmatprep.subr.mxu0 0.0
      %436 = vmatpush1.msra.mxu0 0.0
      %437 = vmatprep.subr.mxu0 0.0
      %438 = vmatpush1.msra.mxu0 0.0
      %439 = vmatprep.subr.mxu0 0.0
      %440 = vmatpush1.msra.mxu0 0.0
      %441 = vmatprep.subr.mxu0 0.0
      %442 = vmatpush1.msra.mxu0 0.0
      %443 = vmatprep.subr.mxu0 0.0
      %444 = vmatpush1.msra.mxu0 0.0
      %445 = vmatprep.subr.mxu0 0.0
      %446 = vmatpush1.msra.mxu0 0.0
      %447 = vmatprep.subr.mxu0 0.0
      %448 = vmatpush1.msra.mxu0 0.0
      %449 = vmatprep.subr.mxu0 0.0
      %450 = vmatpush1.msra.mxu0 0.0
      %451 = vmatprep.subr.mxu0 0.0
      %452 = vmatpush1.msra.mxu0 0.0
      %453 = vmatprep.subr.mxu0 0.0
      %454 = vmatpush1.msra.mxu0 0.0
      %455 = vmatprep.subr.mxu0 0.0
      %456 = vmatpush1.msra.mxu0 0.0
      %457 = vmatprep.subr.mxu0 0.0
      %458 = vmatpush1.msra.mxu0 0.0
      %459 = vmatprep.subr.mxu0 0.0
      %460 = vmatpush1.msra.mxu0 0.0
      %461 = vmatprep.subr.mxu0 0.0
      %462 = vmatpush1.msra.mxu0 0.0
      %463 = vmatprep.subr.mxu0 0.0
      %464 = vmatpush1.msra.mxu0 0.0
      %465 = vmatprep.subr.mxu0 0.0
      %466 = vmatpush1.msra.mxu0 0.0
      %467 = vmatprep.subr.mxu0 0.0
      %468 = vmatpush1.msra.mxu0 0.0
      %469 = vmatprep.subr.mxu0 0.0
      %470 = vmatpush1.msra.mxu0 0.0
      %471 = vmatprep.subr.mxu0 0.0
      %472 = vmatpush1.msra.mxu0 0.0
      %473 = vmatprep.subr.mxu0 0.0
      %474 = vmatpush1.msra.mxu0 0.0
      %475 = vmatprep.subr.mxu0 0.0
      %476 = vmatpush1.msra.mxu0 0.0
      %477 = vmatprep.subr.mxu0 0.0
      %478 = vmatpush1.msra.mxu0 0.0
      %479 = vmatprep.subr.mxu0 0.0
      %480 = vmatpush1.msra.mxu0 0.0
      %481 = vmatprep.subr.mxu0 0.0
      %482 = vmatpush1.msra.mxu0 0.0
      %483 = vmatprep.subr.mxu0 0.0
      %484 = vmatpush1.msra.mxu0 0.0
      %485 = vmatprep.subr.mxu0 0.0
      %486 = vmatpush1.msra.mxu0 0.0
      %487 = vmatprep.subr.mxu0 0.0
      %488 = vmatpush1.msra.mxu0 0.0
      %489 = vmatprep.subr.mxu0 0.0
      %490 = vmatpush1.msra.mxu0 0.0
      %491 = vmatprep.subr.mxu0 0.0
      %492 = vmatpush1.msra.mxu0 0.0
      %493 = vmatprep.subr.mxu0 0.0
      %494 = vmatpush1.msra.mxu0 0.0
      %495 = vmatprep.subr.mxu0 0.0
      %496 = vmatpush1.msra.mxu0 0.0
      %497 = vmatprep.mubr.f32.mxu0 0.0
      %498 = vmatmul.mubr.f32.gmra.mrb[0].mxu0 %v425
      %v499 = vpop.f32.mrb[0].mxu0
      %v500 = vadd.f32 0.0, %v499
      %v501 = vpop.f32.mrb[0].mxu0
      %502 = vmatprep.mubr.f32.mxu0 0.0
      %503 = vmatmul.mubr.f32.gmra.mrb[0].mxu0 %v428
      %v504 = vpop.f32.mrb[0].mxu0
      %v505 = vadd.f32 0.0, %v504
      %v506 = vpop.f32.mrb[0].mxu0
      %507 = vdwg.mxu0
      %v508 = vadd.f32 %v413, %v500
      %v509 = vadd.f32 %v418, %v505
      %v510 = vld [vmem:[#allocation2 + $0x4] sm:$0xff]
      %v511 = vld [vmem:[#allocation2 + $0xc] sm:$0xff]
      %v512 = vld [vmem:[%s1 + $0x8] sm:$0xf]
      %v514 = vsel %vm328, %v510, 0
      %v517 = vsel %vm328, %v511, 0
      %v520 = vsel %vm342, %v512, 0
      %522 = vmatprep.subr.mxu0 0.0
      %523 = vmatpush1.msra.mxu0 %v520
      %524 = vmatprep.subr.mxu0 0.0
      %525 = vmatpush1.msra.mxu0 0.0
      %526 = vmatprep.subr.mxu0 0.0
      %527 = vmatpush1.msra.mxu0 0.0
      %528 = vmatprep.subr.mxu0 0.0
      %529 = vmatpush1.msra.mxu0 0.0
      %530 = vmatprep.subr.mxu0 0.0
      %531 = vmatpush1.msra.mxu0 0.0
      %532 = vmatprep.subr.mxu0 0.0
      %533 = vmatpush1.msra.mxu0 0.0
      %534 = vmatprep.subr.mxu0 0.0
      %535 = vmatpush1.msra.mxu0 0.0
      %536 = vmatprep.subr.mxu0 0.0
      %537 = vmatpush1.msra.mxu0 0.0
      %538 = vmatprep.subr.mxu0 0.0
      %539 = vmatpush1.msra.mxu0 0.0
      %540 = vmatprep.subr.mxu0 0.0
      %541 = vmatpush1.msra.mxu0 0.0
      %542 = vmatprep.subr.mxu0 0.0
      %543 = vmatpush1.msra.mxu0 0.0
      %544 = vmatprep.subr.mxu0 0.0
      %545 = vmatpush1.msra.mxu0 0.0
      %546 = vmatprep.subr.mxu0 0.0
      %547 = vmatpush1.msra.mxu0 0.0
      %548 = vmatprep.subr.mxu0 0.0
      %549 = vmatpush1.msra.mxu0 0.0
      %550 = vmatprep.subr.mxu0 0.0
      %551 = vmatpush1.msra.mxu0 0.0
      %552 = vmatprep.subr.mxu0 0.0
      %553 = vmatpush1.msra.mxu0 0.0
      %554 = vmatprep.subr.mxu0 0.0
      %555 = vmatpush1.msra.mxu0 0.0
      %556 = vmatprep.subr.mxu0 0.0
      %557 = vmatpush1.msra.mxu0 0.0
      %558 = vmatprep.subr.mxu0 0.0
      %559 = vmatpush1.msra.mxu0 0.0
      %560 = vmatprep.subr.mxu0 0.0
      %561 = vmatpush1.msra.mxu0 0.0
      %562 = vmatprep.subr.mxu0 0.0
      %563 = vmatpush1.msra.mxu0 0.0
      %564 = vmatprep.subr.mxu0 0.0
      %565 = vmatpush1.msra.mxu0 0.0
      %566 = vmatprep.subr.mxu0 0.0
      %567 = vmatpush1.msra.mxu0 0.0
      %568 = vmatprep.subr.mxu0 0.0
      %569 = vmatpush1.msra.mxu0 0.0
      %570 = vmatprep.subr.mxu0 0.0
      %571 = vmatpush1.msra.mxu0 0.0
      %572 = vmatprep.subr.mxu0 0.0
      %573 = vmatpush1.msra.mxu0 0.0
      %574 = vmatprep.subr.mxu0 0.0
      %575 = vmatpush1.msra.mxu0 0.0
      %576 = vmatprep.subr.mxu0 0.0
      %577 = vmatpush1.msra.mxu0 0.0
      %578 = vmatprep.subr.mxu0 0.0
      %579 = vmatpush1.msra.mxu0 0.0
      %580 = vmatprep.subr.mxu0 0.0
      %581 = vmatpush1.msra.mxu0 0.0
      %582 = vmatprep.subr.mxu0 0.0
      %583 = vmatpush1.msra.mxu0 0.0
      %584 = vmatprep.subr.mxu0 0.0
      %585 = vmatpush1.msra.mxu0 0.0
      %586 = vmatprep.mubr.f32.mxu0 0.0
      %587 = vmatmul.mubr.f32.gmra.mrb[0].mxu0 %v514
      %v588 = vpop.f32.mrb[0].mxu0
      %v589 = vadd.f32 0.0, %v588
      %v590 = vpop.f32.mrb[0].mxu0
      %591 = vmatprep.mubr.f32.mxu0 0.0
      %592 = vmatmul.mubr.f32.gmra.mrb[0].mxu0 %v517
      %v593 = vpop.f32.mrb[0].mxu0
      %v594 = vadd.f32 0.0, %v593
      %v595 = vpop.f32.mrb[0].mxu0
      %596 = vdwg.mxu0
      %v597 = vadd.f32 %v508, %v589
      %v598 = vadd.f32 %v509, %v594
      %v600 = vlaneseq
      %v601 = vshrl.u32 %v600, 7
      %v602 = vsub.s32 0, %v601
      %v603 = vrot.slane %v331, %v602
      %v605 = vadd.f32 %v597, %v603
      %v606 = vadd.f32 %v598, %v603
      %v607 = vmax.f32 %v605, 0.0
      %v608 = vmax.f32 %v606, 0.0
      %vm609 = vcmask 64512
      %610 = vst.msk [vmem:[#allocation3 + $0x4] sm:$0xff] %vm609, %v607
      %611 = vst.msk [vmem:[#allocation3 + $0xc] sm:$0xff] %vm609, %v608
      %v612 = vld [vmem:[#allocation3] sm:$0xff]
      %v613 = vld [vmem:[#allocation3 + $0x8] sm:$0xff]
      %v614 = vld [vmem:[%s3] sm:$0xff]
      %v616 = vsel %vm609, %v612, 0
      %v619 = vsel %vm609, %v613, 0
      %621 = vmatprep.subr.mxu0 0.0
      %622 = vmatpush1.msra.mxu0 %v614
      %623 = vmatprep.subr.mxu0 0.0
      %624 = vmatpush1.msra.mxu0 0.0
      %625 = vmatprep.subr.mxu0 0.0
      %626 = vmatpush1.msra.mxu0 0.0
      %627 = vmatprep.subr.mxu0 0.0
      %628 = vmatpush1.msra.mxu0 0.0
      %629 = vmatprep.subr.mxu0 0.0
      %630 = vmatpush1.msra.mxu0 0.0
      %631 = vmatprep.subr.mxu0 0.0
      %632 = vmatpush1.msra.mxu0 0.0
      %633 = vmatprep.subr.mxu0 0.0
      %634 = vmatpush1.msra.mxu0 0.0
      %635 = vmatprep.subr.mxu0 0.0
      %636 = vmatpush1.msra.mxu0 0.0
      %637 = vmatprep.subr.mxu0 0.0
      %638 = vmatpush1.msra.mxu0 0.0
      %639 = vmatprep.subr.mxu0 0.0
      %640 = vmatpush1.msra.mxu0 0.0
      %641 = vmatprep.subr.mxu0 0.0
      %642 = vmatpush1.msra.mxu0 0.0
      %643 = vmatprep.subr.mxu0 0.0
      %644 = vmatpush1.msra.mxu0 0.0
      %645 = vmatprep.subr.mxu0 0.0
      %646 = vmatpush1.msra.mxu0 0.0
      %647 = vmatprep.subr.mxu0 0.0
      %648 = vmatpush1.msra.mxu0 0.0
      %649 = vmatprep.subr.mxu0 0.0
      %650 = vmatpush1.msra.mxu0 0.0
      %651 = vmatprep.subr.mxu0 0.0
      %652 = vmatpush1.msra.mxu0 0.0
      %653 = vmatprep.subr.mxu0 0.0
      %654 = vmatpush1.msra.mxu0 0.0
      %655 = vmatprep.subr.mxu0 0.0
      %656 = vmatpush1.msra.mxu0 0.0
      %657 = vmatprep.subr.mxu0 0.0
      %658 = vmatpush1.msra.mxu0 0.0
      %659 = vmatprep.subr.mxu0 0.0
      %660 = vmatpush1.msra.mxu0 0.0
      %661 = vmatprep.subr.mxu0 0.0
      %662 = vmatpush1.msra.mxu0 0.0
      %663 = vmatprep.subr.mxu0 0.0
      %664 = vmatpush1.msra.mxu0 0.0
      %665 = vmatprep.subr.mxu0 0.0
      %666 = vmatpush1.msra.mxu0 0.0
      %667 = vmatprep.subr.mxu0 0.0
      %668 = vmatpush1.msra.mxu0 0.0
      %669 = vmatprep.subr.mxu0 0.0
      %670 = vmatpush1.msra.mxu0 0.0
      %671 = vmatprep.subr.mxu0 0.0
      %672 = vmatpush1.msra.mxu0 0.0
      %673 = vmatprep.subr.mxu0 0.0
      %674 = vmatpush1.msra.mxu0 0.0
      %675 = vmatprep.subr.mxu0 0.0
      %676 = vmatpush1.msra.mxu0 0.0
      %677 = vmatprep.subr.mxu0 0.0
      %678 = vmatpush1.msra.mxu0 0.0
      %679 = vmatprep.subr.mxu0 0.0
      %680 = vmatpush1.msra.mxu0 0.0
      %681 = vmatprep.subr.mxu0 0.0
      %682 = vmatpush1.msra.mxu0 0.0
      %683 = vmatprep.subr.mxu0 0.0
      %684 = vmatpush1.msra.mxu0 0.0
      %685 = vmatprep.mubr.f32.mxu0 0.0
      %686 = vmatmul.mubr.f32.gmra.mrb[0].mxu0 %v616
      %v687 = vpop.f32.mrb[0].mxu0
      %v688 = vadd.f32 0.0, %v687
      %v689 = vpop.f32.mrb[0].mxu0
      %690 = vmatprep.mubr.f32.mxu0 0.0
      %691 = vmatmul.mubr.f32.gmra.mrb[0].mxu0 %v619
      %v692 = vpop.f32.mrb[0].mxu0
      %v693 = vadd.f32 0.0, %v692
      %v694 = vpop.f32.mrb[0].mxu0
      %695 = vdwg.mxu0
      %v696 = vld [vmem:[#allocation3 + $0x2] sm:$0xff]
      %v697 = vld [vmem:[#allocation3 + $0xa] sm:$0xff]
      %v698 = vld [vmem:[%s3 + $0x8] sm:$0xff]
      %v700 = vsel %vm609, %v696, 0
      %v703 = vsel %vm609, %v697, 0
      %705 = vmatprep.subr.mxu0 0.0
      %706 = vmatpush1.msra.mxu0 %v698
      %707 = vmatprep.subr.mxu0 0.0
      %708 = vmatpush1.msra.mxu0 0.0
      %709 = vmatprep.subr.mxu0 0.0
      %710 = vmatpush1.msra.mxu0 0.0
      %711 = vmatprep.subr.mxu0 0.0
      %712 = vmatpush1.msra.mxu0 0.0
      %713 = vmatprep.subr.mxu0 0.0
      %714 = vmatpush1.msra.mxu0 0.0
      %715 = vmatprep.subr.mxu0 0.0
      %716 = vmatpush1.msra.mxu0 0.0
      %717 = vmatprep.subr.mxu0 0.0
      %718 = vmatpush1.msra.mxu0 0.0
      %719 = vmatprep.subr.mxu0 0.0
      %720 = vmatpush1.msra.mxu0 0.0
      %721 = vmatprep.subr.mxu0 0.0
      %722 = vmatpush1.msra.mxu0 0.0
      %723 = vmatprep.subr.mxu0 0.0
      %724 = vmatpush1.msra.mxu0 0.0
      %725 = vmatprep.subr.mxu0 0.0
      %726 = vmatpush1.msra.mxu0 0.0
      %727 = vmatprep.subr.mxu0 0.0
      %728 = vmatpush1.msra.mxu0 0.0
      %729 = vmatprep.subr.mxu0 0.0
      %730 = vmatpush1.msra.mxu0 0.0
      %731 = vmatprep.subr.mxu0 0.0
      %732 = vmatpush1.msra.mxu0 0.0
      %733 = vmatprep.subr.mxu0 0.0
      %734 = vmatpush1.msra.mxu0 0.0
      %735 = vmatprep.subr.mxu0 0.0
      %736 = vmatpush1.msra.mxu0 0.0
      %737 = vmatprep.subr.mxu0 0.0
      %738 = vmatpush1.msra.mxu0 0.0
      %739 = vmatprep.subr.mxu0 0.0
      %740 = vmatpush1.msra.mxu0 0.0
      %741 = vmatprep.subr.mxu0 0.0
      %742 = vmatpush1.msra.mxu0 0.0
      %743 = vmatprep.subr.mxu0 0.0
      %744 = vmatpush1.msra.mxu0 0.0
      %745 = vmatprep.subr.mxu0 0.0
      %746 = vmatpush1.msra.mxu0 0.0
      %747 = vmatprep.subr.mxu0 0.0
      %748 = vmatpush1.msra.mxu0 0.0
      %749 = vmatprep.subr.mxu0 0.0
      %750 = vmatpush1.msra.mxu0 0.0
      %751 = vmatprep.subr.mxu0 0.0
      %752 = vmatpush1.msra.mxu0 0.0
      %753 = vmatprep.subr.mxu0 0.0
      %754 = vmatpush1.msra.mxu0 0.0
      %755 = vmatprep.subr.mxu0 0.0
      %756 = vmatpush1.msra.mxu0 0.0
      %757 = vmatprep.subr.mxu0 0.0
      %758 = vmatpush1.msra.mxu0 0.0
      %759 = vmatprep.subr.mxu0 0.0
      %760 = vmatpush1.msra.mxu0 0.0
      %761 = vmatprep.subr.mxu0 0.0
      %762 = vmatpush1.msra.mxu0 0.0
      %763 = vmatprep.subr.mxu0 0.0
      %764 = vmatpush1.msra.mxu0 0.0
      %765 = vmatprep.subr.mxu0 0.0
      %766 = vmatpush1.msra.mxu0 0.0
      %767 = vmatprep.subr.mxu0 0.0
      %768 = vmatpush1.msra.mxu0 0.0
      %769 = vmatprep.mubr.f32.mxu0 0.0
      %770 = vmatmul.mubr.f32.gmra.mrb[0].mxu0 %v700
      %v771 = vpop.f32.mrb[0].mxu0
      %v772 = vadd.f32 0.0, %v771
      %v773 = vpop.f32.mrb[0].mxu0
      %774 = vmatprep.mubr.f32.mxu0 0.0
      %775 = vmatmul.mubr.f32.gmra.mrb[0].mxu0 %v703
      %v776 = vpop.f32.mrb[0].mxu0
      %v777 = vadd.f32 0.0, %v776
      %v778 = vpop.f32.mrb[0].mxu0
      %779 = vdwg.mxu0
      %v780 = vadd.f32 %v688, %v772
      %v781 = vadd.f32 %v693, %v777
      %v782 = vld [vmem:[#allocation3 + $0x4] sm:$0xff]
      %v783 = vld [vmem:[#allocation3 + $0xc] sm:$0xff]
      %v784 = vld [vmem:[%s3 + $0x10] sm:$0xff]
      %v786 = vsel %vm609, %v782, 0
      %v789 = vsel %vm609, %v783, 0
      %791 = vmatprep.subr.mxu0 0.0
      %792 = vmatpush1.msra.mxu0 %v784
      %793 = vmatprep.subr.mxu0 0.0
      %794 = vmatpush1.msra.mxu0 0.0
      %795 = vmatprep.subr.mxu0 0.0
      %796 = vmatpush1.msra.mxu0 0.0
      %797 = vmatprep.subr.mxu0 0.0
      %798 = vmatpush1.msra.mxu0 0.0
      %799 = vmatprep.subr.mxu0 0.0
      %800 = vmatpush1.msra.mxu0 0.0
      %801 = vmatprep.subr.mxu0 0.0
      %802 = vmatpush1.msra.mxu0 0.0
      %803 = vmatprep.subr.mxu0 0.0
      %804 = vmatpush1.msra.mxu0 0.0
      %805 = vmatprep.subr.mxu0 0.0
      %806 = vmatpush1.msra.mxu0 0.0
      %807 = vmatprep.subr.mxu0 0.0
      %808 = vmatpush1.msra.mxu0 0.0
      %809 = vmatprep.subr.mxu0 0.0
      %810 = vmatpush1.msra.mxu0 0.0
      %811 = vmatprep.subr.mxu0 0.0
      %812 = vmatpush1.msra.mxu0 0.0
      %813 = vmatprep.subr.mxu0 0.0
      %814 = vmatpush1.msra.mxu0 0.0
      %815 = vmatprep.subr.mxu0 0.0
      %816 = vmatpush1.msra.mxu0 0.0
      %817 = vmatprep.subr.mxu0 0.0
      %818 = vmatpush1.msra.mxu0 0.0
      %819 = vmatprep.subr.mxu0 0.0
      %820 = vmatpush1.msra.mxu0 0.0
      %821 = vmatprep.subr.mxu0 0.0
      %822 = vmatpush1.msra.mxu0 0.0
      %823 = vmatprep.subr.mxu0 0.0
      %824 = vmatpush1.msra.mxu0 0.0
      %825 = vmatprep.subr.mxu0 0.0
      %826 = vmatpush1.msra.mxu0 0.0
      %827 = vmatprep.subr.mxu0 0.0
      %828 = vmatpush1.msra.mxu0 0.0
      %829 = vmatprep.subr.mxu0 0.0
      %830 = vmatpush1.msra.mxu0 0.0
      %831 = vmatprep.subr.mxu0 0.0
      %832 = vmatpush1.msra.mxu0 0.0
      %833 = vmatprep.subr.mxu0 0.0
      %834 = vmatpush1.msra.mxu0 0.0
      %835 = vmatprep.subr.mxu0 0.0
      %836 = vmatpush1.msra.mxu0 0.0
      %837 = vmatprep.subr.mxu0 0.0
      %838 = vmatpush1.msra.mxu0 0.0
      %839 = vmatprep.subr.mxu0 0.0
      %840 = vmatpush1.msra.mxu0 0.0
      %841 = vmatprep.subr.mxu0 0.0
      %842 = vmatpush1.msra.mxu0 0.0
      %843 = vmatprep.subr.mxu0 0.0
      %844 = vmatpush1.msra.mxu0 0.0
      %845 = vmatprep.subr.mxu0 0.0
      %846 = vmatpush1.msra.mxu0 0.0
      %847 = vmatprep.subr.mxu0 0.0
      %848 = vmatpush1.msra.mxu0 0.0
      %849 = vmatprep.subr.mxu0 0.0
      %850 = vmatpush1.msra.mxu0 0.0
      %851 = vmatprep.subr.mxu0 0.0
      %852 = vmatpush1.msra.mxu0 0.0
      %853 = vmatprep.subr.mxu0 0.0
      %854 = vmatpush1.msra.mxu0 0.0
      %855 = vmatprep.mubr.f32.mxu0 0.0
      %856 = vmatmul.mubr.f32.gmra.mrb[0].mxu0 %v786
      %v857 = vpop.f32.mrb[0].mxu0
      %v858 = vadd.f32 0.0, %v857
      %v859 = vpop.f32.mrb[0].mxu0
      %860 = vmatprep.mubr.f32.mxu0 0.0
      %861 = vmatmul.mubr.f32.gmra.mrb[0].mxu0 %v789
      %v862 = vpop.f32.mrb[0].mxu0
      %v863 = vadd.f32 0.0, %v862
      %v864 = vpop.f32.mrb[0].mxu0
      %865 = vdwg.mxu0
      %v866 = vadd.f32 %v780, %v858
      %v867 = vadd.f32 %v781, %v863
      %v869 = vlaneseq
      %v870 = vshrl.u32 %v869, 7
      %v871 = vsub.s32 0, %v870
      %v872 = vrot.slane %v332, %v871
      %v874 = vadd.f32 %v866, %v872
      %v875 = vadd.f32 %v867, %v872
      %v876 = vmax.f32 %v874, 0.0
      %v877 = vmax.f32 %v875, 0.0
      %v878 = vld [vmem:[%s306] sm:$0xff]
      %v879 = vld [vmem:[%s306 + $0x8] sm:$0xff]
      %v880 = vld [vmem:[%s5] sm:$0xf]
      %v882 = vsel %vm328, %v878, 0
      %v885 = vsel %vm328, %v879, 0
      %v888 = vsel %vm342, %v880, 0
      %890 = vmatprep.subr.mxu0 0.0
      %891 = vmatpush1.msra.mxu0 %v888
      %892 = vmatprep.subr.mxu0 0.0
      %893 = vmatpush1.msra.mxu0 0.0
      %894 = vmatprep.subr.mxu0 0.0
      %895 = vmatpush1.msra.mxu0 0.0
      %896 = vmatprep.subr.mxu0 0.0
      %897 = vmatpush1.msra.mxu0 0.0
      %898 = vmatprep.subr.mxu0 0.0
      %899 = vmatpush1.msra.mxu0 0.0
      %900 = vmatprep.subr.mxu0 0.0
      %901 = vmatpush1.msra.mxu0 0.0
      %902 = vmatprep.subr.mxu0 0.0
      %903 = vmatpush1.msra.mxu0 0.0
      %904 = vmatprep.subr.mxu0 0.0
      %905 = vmatpush1.msra.mxu0 0.0
      %906 = vmatprep.subr.mxu0 0.0
      %907 = vmatpush1.msra.mxu0 0.0
      %908 = vmatprep.subr.mxu0 0.0
      %909 = vmatpush1.msra.mxu0 0.0
      %910 = vmatprep.subr.mxu0 0.0
      %911 = vmatpush1.msra.mxu0 0.0
      %912 = vmatprep.subr.mxu0 0.0
      %913 = vmatpush1.msra.mxu0 0.0
      %914 = vmatprep.subr.mxu0 0.0
      %915 = vmatpush1.msra.mxu0 0.0
      %916 = vmatprep.subr.mxu0 0.0
      %917 = vmatpush1.msra.mxu0 0.0
      %918 = vmatprep.subr.mxu0 0.0
      %919 = vmatpush1.msra.mxu0 0.0
      %920 = vmatprep.subr.mxu0 0.0
      %921 = vmatpush1.msra.mxu0 0.0
      %922 = vmatprep.subr.mxu0 0.0
      %923 = vmatpush1.msra.mxu0 0.0
      %924 = vmatprep.subr.mxu0 0.0
      %925 = vmatpush1.msra.mxu0 0.0
      %926 = vmatprep.subr.mxu0 0.0
      %927 = vmatpush1.msra.mxu0 0.0
      %928 = vmatprep.subr.mxu0 0.0
      %929 = vmatpush1.msra.mxu0 0.0
      %930 = vmatprep.subr.mxu0 0.0
      %931 = vmatpush1.msra.mxu0 0.0
      %932 = vmatprep.subr.mxu0 0.0
      %933 = vmatpush1.msra.mxu0 0.0
      %934 = vmatprep.subr.mxu0 0.0
      %935 = vmatpush1.msra.mxu0 0.0
      %936 = vmatprep.subr.mxu0 0.0
      %937 = vmatpush1.msra.mxu0 0.0
      %938 = vmatprep.subr.mxu0 0.0
      %939 = vmatpush1.msra.mxu0 0.0
      %940 = vmatprep.subr.mxu0 0.0
      %941 = vmatpush1.msra.mxu0 0.0
      %942 = vmatprep.subr.mxu0 0.0
      %943 = vmatpush1.msra.mxu0 0.0
      %944 = vmatprep.subr.mxu0 0.0
      %945 = vmatpush1.msra.mxu0 0.0
      %946 = vmatprep.subr.mxu0 0.0
      %947 = vmatpush1.msra.mxu0 0.0
      %948 = vmatprep.subr.mxu0 0.0
      %949 = vmatpush1.msra.mxu0 0.0
      %950 = vmatprep.subr.mxu0 0.0
      %951 = vmatpush1.msra.mxu0 0.0
      %952 = vmatprep.subr.mxu0 0.0
      %953 = vmatpush1.msra.mxu0 0.0
      %954 = vmatprep.mubr.f32.mxu0 0.0
      %955 = vmatmul.mubr.f32.gmra.mrb[0].mxu0 %v882
      %v956 = vpop.f32.mrb[0].mxu0
      %v957 = vadd.f32 0.0, %v956
      %v958 = vpop.f32.mrb[0].mxu0
      %959 = vmatprep.mubr.f32.mxu0 0.0
      %960 = vmatmul.mubr.f32.gmra.mrb[0].mxu0 %v885
      %v961 = vpop.f32.mrb[0].mxu0
      %v962 = vadd.f32 0.0, %v961
      %v963 = vpop.f32.mrb[0].mxu0
      %964 = vdwg.mxu0
      %v965 = vld [vmem:[%s6] sm:$0x1]
      %v967 = vlaneseq
      %v968 = vshrl.u32 %v967, 7
      %v969 = vsub.s32 0, %v968
      %v970 = vrot.slane %v965, %v969
      %v972 = vadd.f32 %v957, %v970
      %v973 = vadd.f32 %v962, %v970
      %v974 = vadd.f32 %v876, %v972
      %v975 = vadd.f32 %v877, %v973
      %v976 = vmax.f32 %v974, 0.0
      %v977 = vmax.f32 %v975, 0.0
      %978 = vst.msk [vmem:[%s316] sm:$0xff] %vm609, %v976
      %979 = vst.msk [vmem:[%s316 + $0x8] sm:$0xff] %vm609, %v977
      %s980 = sadd.s32 %s23, 1
      %p981 = scmp.lt.s32.totalorder %s980, 1
      // Predicated region
      $region53: #{tpu_custom_call.1} parent=47 // pred_check
        %p982 = pneg %p981
      $region54: #{tpu_custom_call.1} parent=47 // pred_check_branch
        %984 = sbr.rel (%p982) target = $region56
      $region55: #{tpu_custom_call.1} parent=47 // pred_region
        %v985 = vld [vmem:[#allocation2 + $0x10] sm:$0xf]
        %vm986 = vcmask 27648
        %987 = vst.msk [vmem:[#allocation2] sm:$0xf] %vm986, %v985
        %v988 = vld [vmem:[#allocation3 + $0x10] sm:$0xf]
        %vm989 = vcmask 60416
        %990 = vst.msk [vmem:[#allocation3] sm:$0xf] %vm989, %v988
      $region56: #{tpu_custom_call.1} parent=47 // pred_fallthru
        _
      %s991 = smul.u32 2, %s23
      %p992 = scmp.lt.s32.totalorder %s22, 1
      %s993 = scalar_select %p992, %s22, 1
      %p994 = scmp.lt.s32.totalorder %s991, 1
      %s995 = scalar_select %p994, %s991, 1
      %s996 = smul.addr %s993, 2
      %s997 = sadd.s32 %s995, %s996
      %s998 = smul.addr %s997, 8
      %s999 = scalar_lea.vmem %s7, %s998
      // Predicated region
      $region57: #{tpu_custom_call.1} parent=47 // pred_check
        %p1000 = pneg %p204
      $region58: #{tpu_custom_call.1} parent=47 // pred_check_branch
        %1002 = sbr.rel (%p1000) target = $region60
      $region59: #{tpu_custom_call.1} parent=47 // pred_region
        %s1003 = smul.u32 2, %s23
      $region60: #{tpu_custom_call.1} parent=47 // pred_fallthru
        _
    $region48: #{tpu_custom_call.1} parent=5 // pred_fallthru
      _
    %p1004 = scmp.le.s32.totalorder 2, %s13
    // Predicated region
    $region61: #{tpu_custom_call.1} parent=5 // pred_check
      %p1005 = pneg %p1004
    $region62: #{tpu_custom_call.1} parent=5 // pred_check_branch
      %1007 = sbr.rel (%p1005) target = $region64
    $region63: #{tpu_custom_call.1} parent=5 // pred_region
      %s1008 = ssub.s32 %s13, 2
      // Predicated region
      $region65: #{tpu_custom_call.1} parent=63 // pred_check
        %p1009 = pneg %p210
      $region66: #{tpu_custom_call.1} parent=63 // pred_check_branch
        %1011 = sbr.rel (%p1009) target = $region68
      $region67: #{tpu_custom_call.1} parent=63 // pred_region
        %s1012 = smul.u32 2, %s25
        %p1013 = scmp.lt.s32.totalorder %s24, 1
        %s1014 = scalar_select %p1013, %s24, 1
        %p1015 = scmp.lt.s32.totalorder %s1012, 1
        %s1016 = scalar_select %p1015, %s1012, 1
        %s1017 = smul.addr %s1014, 2
        %s1018 = sadd.s32 %s1016, %s1017
        %s1019 = smul.addr %s1018, 8
        %s1020 = scalar_lea.vmem %s7, %s1019
      $region68: #{tpu_custom_call.1} parent=63 // pred_fallthru
        _
    $region64: #{tpu_custom_call.1} parent=5 // pred_fallthru
      _
  $region6: #{tpu_custom_call.1} parent=0 // loop_footer
    %s17 = sadd.s32 1, %s13
  $region7: #{tpu_custom_call.1} parent=0 // loop_footer_branch
    %12 = sbr.rel target = $region3
  $region8: #{tpu_custom_call.1} parent=0 // loop_exit
    _

</llo_original>
